<compile_context>
chip_gen: v7x
topology: tpu7x:2x2x1
jax: 0.10.0
libtpu: 0.0.40
codegen_flags: <defaults>
</compile_context>

<pallas_src>
import functools
import math

import jax
import jax.numpy as jnp
from jax.experimental import pallas as pl
from jax.experimental.pallas import tpu as pltpu


def _round_up(v, m):
    return (v + m - 1) // m * m


def _cdiv(a, b):
    return -(-a // b)


def _tpu_config():
    """Best-effort (generation, vmem_capacity_bytes) of the local TPU."""
    kind = ""
    try:
        kind = jax.devices()[0].device_kind.lower()
    except Exception:
        pass
    gen = None
    for g in (7, 6, 5, 4):
        if f"v{g}" in kind:
            gen = g
            break
    vmem_cap = None
    try:
        vmem_cap = int(pltpu.get_tpu_info().vmem_capacity_bytes)
    except Exception:
        vmem_cap = None
    if vmem_cap is None:
        # v7x has 64 MiB/TC, v4/v5e/v6e have 128 MiB; be conservative if unknown.
        if gen is not None and gen >= 7:
            vmem_cap = 64 << 20
        elif gen is not None:
            vmem_cap = 128 << 20
        else:
            vmem_cap = 64 << 20
    if gen is None:
        gen = 6
    return gen, vmem_cap


# --------------------------------------------------------------------------
# Kernels
# --------------------------------------------------------------------------
def _mlp_res_kernel(x_ref, w1_ref, b1_ref, w2_ref, b2_ref, o_ref, *, approx_gelu):
    """One (TM, E_pad) row tile: out = GELU(x @ W1 + b1) @ W2 + b2 + x.

    Weights are fully resident in VMEM (single-buffered)."""
    x_bf = x_ref[...].astype(jnp.bfloat16)                      # bf16 MXU operand
    h = jnp.dot(x_bf, w1_ref[...], preferred_element_type=jnp.float32)
    h = h + b1_ref[...]                                         # f32 bias add
    g = jax.nn.gelu(h, approximate=approx_gelu).astype(jnp.bfloat16)
    y = jnp.dot(g, w2_ref[...], preferred_element_type=jnp.float32)
    y = y + b2_ref[...]                                         # f32 bias add
    # Residual re-read from the ref (short f32 live range), add in f32.
    o_ref[...] = (y + x_ref[...].astype(jnp.float32)).astype(o_ref.dtype)


def _mlp_res_kernel_htiled(x_ref, w1_ref, b1_ref, w2_ref, b2_ref, o_ref,
                           acc_ref, *, approx_gelu):
    """Hidden-dim-tiled variant: grid = (row tiles, H tiles), f32 accumulator."""
    j = pl.program_id(1)

    @pl.when(j == 0)
    def _():
        acc_ref[...] = jnp.zeros_like(acc_ref)

    x_bf = x_ref[...].astype(jnp.bfloat16)
    h = jnp.dot(x_bf, w1_ref[...], preferred_element_type=jnp.float32)
    h = h + b1_ref[...]
    g = jax.nn.gelu(h, approximate=approx_gelu).astype(jnp.bfloat16)
    acc_ref[...] += jnp.dot(g, w2_ref[...], preferred_element_type=jnp.float32)

    @pl.when(j == pl.num_programs(1) - 1)
    def _():
        o_ref[...] = (acc_ref[...] + b2_ref[...]
                      + x_ref[...].astype(jnp.float32)).astype(o_ref.dtype)


# --------------------------------------------------------------------------
# Wrapper
# --------------------------------------------------------------------------
def make_residual_add_mlp(w1, b1, w2, b2, *, tm=None, exact_gelu=False,
                          force_h_tiled=False, th=None):
    """Returns a jitted fn(x) computing GELU(x @ W1 + b1) @ W2 + b2 + x.

    Weight padding and f32->bf16 conversion happen once here (hoisted out of
    the per-call hot path).
    """
    gen, vmem_cap = _tpu_config()
    # Exact erf-GELU (torch default) on v5e / if requested; tanh-GELU (EUP) on
    # v6e/v7x where the erf polynomial would otherwise pressure the VALU slot.
    approx_gelu = (not exact_gelu) and gen >= 6
    h_align = 256 if gen >= 6 else 128          # 2x256^2 MXU on v6e/v7x

    E, H = w1.shape
    assert w2.shape == (H, E) and b1.shape == (H,) and b2.shape == (E,)
    E_pad = _round_up(E, 128)
    H_pad = _round_up(H, h_align)

    w1_p = jnp.pad(jnp.asarray(w1, jnp.float32),
                   ((0, E_pad - E), (0, H_pad - H))).astype(jnp.bfloat16)
    w2_p = jnp.pad(jnp.asarray(w2, jnp.float32),
                   ((0, H_pad - H), (0, E_pad - E))).astype(jnp.bfloat16)
    b1_p = jnp.pad(jnp.asarray(b1, jnp.float32), (0, H_pad - H)).reshape(1, H_pad)
    b2_p = jnp.pad(jnp.asarray(b2, jnp.float32), (0, E_pad - E)).reshape(1, E_pad)

    # VMEM budget: physical capacity minus headroom for Mosaic internal scratch.
    vmem_budget = int(min(0.82 * vmem_cap, vmem_cap - (12 << 20)))
    vmem_budget = max(vmem_budget, 32 << 20)
    default_tm = 256 if gen >= 7 else 512

    # Single-buffered resident weights (pl.Buffered(1)) + f32 biases.
    weight_bytes_1buf = 2 * (E_pad * H_pad + H_pad * E_pad) + 4 * (H_pad + E_pad)

    def _resident_need(tm_rows):
        io = 2 * tm_rows * E_pad * 4 * 2          # x & out tiles, 2-deep, f32
        hid = 2 * tm_rows * H_pad * 4             # f32 hidden + temps
        return weight_bytes_1buf + io + hid + (2 << 20)

    def _htiled_need(tm_rows, th_cols):
        w = 2 * 2 * (E_pad * th_cols + th_cols * E_pad)   # bf16 blocks, 2-deep
        io = 2 * tm_rows * E_pad * 4 * 2
        acc = tm_rows * E_pad * 4
        hid = 2 * tm_rows * th_cols * 4
        return w + io + acc + hid + 4 * (H_pad + E_pad) + (2 << 20)

    def apply(x):
        *lead, Ein = x.shape
        assert Ein == E, f"expected last dim {E}, got {Ein}"
        M = int(math.prod(lead)) if lead else 1

        x2d = x.reshape(M, E).astype(jnp.float32)
        if E_pad != E:                            # only for non-128-aligned widths
            x2d = jnp.pad(x2d, ((0, 0), (0, E_pad - E)))

        # ---- row tile selection --------------------------------------------
        tm_rows = tm if tm is not None else default_tm
        tm_rows = max(8, min(_round_up(tm_rows, 8), _round_up(M, 8)))
        if _cdiv(M, tm_rows) < 2 and M > 8:       # keep both v7x TCs busy
            tm_rows = _round_up(_cdiv(M, 2), 8)

        use_h_tiled = force_h_tiled or (weight_bytes_1buf + (8 << 20) > vmem_budget)
        if not use_h_tiled:
            while _resident_need(tm_rows) > vmem_budget and tm_rows > 64:
                tm_rows = max(64, _round_up(tm_rows // 2, 8))
            if _resident_need(tm_rows) > vmem_budget:
                use_h_tiled = True

        cost = pl.CostEstimate(
            flops=4 * M * E_pad * H_pad,                       # two matmuls
            transcendentals=M * H_pad,                         # erf / tanh
            bytes_accessed=(2 * M * E_pad * 4                  # x in + out
                            + 2 * (E_pad * H_pad + H_pad * E_pad)   # bf16 weights
                            + 4 * (H_pad + E_pad)),                 # biases
        )
        out_shape = jax.ShapeDtypeStruct((M, E_pad), x.dtype)

        if not use_h_tiled:
            grid_m = _cdiv(M, tm_rows)
            need = _resident_need(tm_rows)
            vmem_limit = int(min(vmem_budget, max(need + (8 << 20), 32 << 20)))
            kern = functools.partial(_mlp_res_kernel, approx_gelu=approx_gelu)
            resident = pl.Buffered(1)             # constant index_map -> 1 buffer
            out_p = pl.pallas_call(
                kern,
                out_shape=out_shape,
                grid_spec=pltpu.PrefetchScalarGridSpec(
                    num_scalar_prefetch=0,
                    grid=(grid_m,),
                    in_specs=[
                        pl.BlockSpec((tm_rows, E_pad), lambda i: (i, 0)),
                        pl.BlockSpec((E_pad, H_pad), lambda i: (0, 0),
                                     pipeline_mode=resident),
                        pl.BlockSpec((1, H_pad), lambda i: (0, 0),
                                     pipeline_mode=resident),
                        pl.BlockSpec((H_pad, E_pad), lambda i: (0, 0),
                                     pipeline_mode=resident),
                        pl.BlockSpec((1, E_pad), lambda i: (0, 0),
                                     pipeline_mode=resident),
                    ],
                    out_specs=pl.BlockSpec((tm_rows, E_pad), lambda i: (i, 0)),
                ),
                compiler_params=pltpu.CompilerParams(
                    dimension_semantics=("parallel",),
                    vmem_limit_bytes=vmem_limit),
                cost_estimate=cost,
            )(x2d, w1_p, b1_p, w2_p, b2_p)
        else:
            # ---- hidden-dim-tiled fallback (weights too big for residency) --
            th_cols = th
            if th_cols is None:
                th_cols = h_align
                for k in range(H_pad // h_align, 0, -1):
                    cand = k * h_align
                    if H_pad % cand == 0 and _htiled_need(tm_rows, cand) <= vmem_budget:
                        th_cols = cand
                        break
            assert H_pad % th_cols == 0, "hidden tile must divide padded hidden dim"
            while _htiled_need(tm_rows, th_cols) > vmem_budget and tm_rows > 64:
                tm_rows = max(64, _round_up(tm_rows // 2, 8))
            grid_m = _cdiv(M, tm_rows)
            grid_h = H_pad // th_cols
            need = _htiled_need(tm_rows, th_cols)
            vmem_limit = int(min(vmem_budget, max(need + (8 << 20), 32 << 20)))
            kern = functools.partial(_mlp_res_kernel_htiled, approx_gelu=approx_gelu)
            out_p = pl.pallas_call(
                kern,
                out_shape=out_shape,
                grid_spec=pltpu.PrefetchScalarGridSpec(
                    num_scalar_prefetch=0,
                    grid=(grid_m, grid_h),
                    in_specs=[
                        pl.BlockSpec((tm_rows, E_pad), lambda i, j: (i, 0)),
                        pl.BlockSpec((E_pad, th_cols), lambda i, j: (0, j)),
                        pl.BlockSpec((1, th_cols), lambda i, j: (0, j)),
                        pl.BlockSpec((th_cols, E_pad), lambda i, j: (j, 0)),
                        pl.BlockSpec((1, E_pad), lambda i, j: (0, 0),
                                     pipeline_mode=pl.Buffered(1)),
                    ],
                    out_specs=pl.BlockSpec((tm_rows, E_pad), lambda i, j: (i, 0)),
                    scratch_shapes=[pltpu.VMEM((tm_rows, E_pad), jnp.float32)],
                ),
                compiler_params=pltpu.CompilerParams(
                    dimension_semantics=("parallel", "arbitrary"),
                    vmem_limit_bytes=vmem_limit),
                cost_estimate=cost,
            )(x2d, w1_p, b1_p, w2_p, b2_p)

        out = out_p if E_pad == E else out_p[:, :E]
        return out.reshape(*lead, E)

    return jax.jit(apply)


# --------------------------------------------------------------------------
# Pure-JAX reference mirroring the kernel's dtype choices
# --------------------------------------------------------------------------
def _reference(x, w1, b1, w2, b2, approx_gelu):
    E = x.shape[-1]
    x2d = x.reshape(-1, E).astype(jnp.float32)
    xb = x2d.astype(jnp.bfloat16).astype(jnp.float32)
    w1b = w1.astype(jnp.bfloat16).astype(jnp.float32)
    w2b = w2.astype(jnp.bfloat16).astype(jnp.float32)
    h = xb @ w1b + b1
    g = jax.nn.gelu(h, approximate=approx_gelu)
    gb = g.astype(jnp.bfloat16).astype(jnp.float32)
    y = gb @ w2b + b2 + x2d
    return y.reshape(x.shape)


if __name__ == "__main__":
    base_key = jax.random.PRNGKey(0)

    def run_case(B, S, E, H, **kw):
        ks = jax.random.split(jax.random.fold_in(base_key, 1009 * E + H), 5)
        x = jax.random.normal(ks[0], (B, S, E), dtype=jnp.float32)
        w1 = jax.random.normal(ks[1], (E, H), dtype=jnp.float32) * (1.0 / E ** 0.5)
        b1 = jax.random.normal(ks[2], (H,), dtype=jnp.float32) * 0.02
        w2 = jax.random.normal(ks[3], (H, E), dtype=jnp.float32) * (1.0 / H ** 0.5)
        b2 = jax.random.normal(ks[4], (E,), dtype=jnp.float32) * 0.02

        fwd = make_residual_add_mlp(w1, b1, w2, b2, **kw)
        out = jax.block_until_ready(fwd(x))

        gen, _ = _tpu_config()
        approx_gelu = (not kw.get("exact_gelu", False)) and gen >= 6
        ref = _reference(x, w1, b1, w2, b2, approx_gelu)
        err = float(jnp.max(jnp.abs(out - ref)))
        assert out.shape == x.shape, (out.shape, x.shape)
        assert jnp.allclose(out, ref, atol=2e-2, rtol=2e-2), (
            f"mismatch (B={B},S={S},E={E},H={H}): max abs err {err}")

    # 1) Small ViT-like shapes (E not 128-aligned -> column pad/slice path,
    #    resident-weight kernel).
    run_case(2, 8, 32, 64)
    # 2) 128-aligned E (no pad / no slice), ragged row tile, resident kernel.
    run_case(1, 40, 128, 256)
    # 3) Forced hidden-dim-tiled fallback (accumulator kernel, 2 H-steps).
    run_case(2, 16, 128, 512, force_h_tiled=True, th=256)

    print("KERNEL_OK")
</pallas_src>

<mosaic_0001>
module attributes {stable_mosaic.version = 11 : i64} {
  func.func @_mlp_res_kernel(%arg0: i32, %arg1: memref<8x128xf32, #tpu.memory_space<vmem>>, %arg2: memref<128x256xbf16, #tpu.memory_space<vmem>>, %arg3: memref<1x256xf32, #tpu.memory_space<vmem>>, %arg4: memref<256x128xbf16, #tpu.memory_space<vmem>>, %arg5: memref<1x128xf32, #tpu.memory_space<vmem>>, %arg6: memref<8x128xf32, #tpu.memory_space<vmem>>) attributes {dimension_semantics = [#tpu.dimension_semantics<parallel>], iteration_bounds = array<i64: 2>, scalar_prefetch = 0 : i64, scratch_operands = 0 : i64, tpu.core_type = #tpu.core_type<tc>, window_params = [{transform_indices = @transform_0, window_bounds = array<i64: 8, 128>}, {pipeline_mode = #tpu.pipeline_mode<synchronous>, transform_indices = @transform_1, window_bounds = array<i64: 128, 256>}, {pipeline_mode = #tpu.pipeline_mode<synchronous>, transform_indices = @transform_2, window_bounds = array<i64: 1, 256>}, {pipeline_mode = #tpu.pipeline_mode<synchronous>, transform_indices = @transform_3, window_bounds = array<i64: 256, 128>}, {pipeline_mode = #tpu.pipeline_mode<synchronous>, transform_indices = @transform_4, window_bounds = array<i64: 1, 128>}, {transform_indices = @transform_5, window_bounds = array<i64: 8, 128>}]} {
    %c0 = arith.constant 0 : index
    %c0_0 = arith.constant 0 : index
    %0 = vector.load %arg1[%c0, %c0_0] : memref<8x128xf32, #tpu.memory_space<vmem>>, vector<8x128xf32>
    %1 = arith.truncf %0 : vector<8x128xf32> to vector<8x128xbf16>
    %c0_1 = arith.constant 0 : index
    %c0_2 = arith.constant 0 : index
    %2 = vector.load %arg2[%c0_1, %c0_2] : memref<128x256xbf16, #tpu.memory_space<vmem>>, vector<128x256xbf16>
    %cst = arith.constant dense<0.000000e+00> : vector<8x256xf32>
    %3 = tpu.matmul %1, %2, %cst {dimension_numbers = #tpu.dot_dimension_numbers<[1], [0], [0], [1], [0, 0, 1, 1], [], []>} : vector<8x128xbf16>, vector<128x256xbf16>, vector<8x256xf32> -> vector<8x256xf32>
    %c0_3 = arith.constant 0 : index
    %c0_4 = arith.constant 0 : index
    %4 = vector.load %arg3[%c0_3, %c0_4] : memref<1x256xf32, #tpu.memory_space<vmem>>, vector<1x256xf32>
    %5 = vector.broadcast %4 : vector<1x256xf32> to vector<8x256xf32>
    %6 = arith.addf %3, %5 : vector<8x256xf32>
    %7 = arith.mulf %6, %6 : vector<8x256xf32>
    %8 = arith.mulf %6, %7 : vector<8x256xf32>
    %cst_5 = arith.constant 4.471500e-02 : f32
    %9 = vector.broadcast %cst_5 : f32 to vector<8x256xf32>
    %10 = arith.mulf %9, %8 : vector<8x256xf32>
    %11 = arith.addf %6, %10 : vector<8x256xf32>
    %cst_6 = arith.constant 0.797884583 : f32
    %12 = vector.broadcast %cst_6 : f32 to vector<8x256xf32>
    %13 = arith.mulf %12, %11 : vector<8x256xf32>
    %14 = math.tanh %13 : vector<8x256xf32>
    %cst_7 = arith.constant 1.000000e+00 : f32
    %15 = vector.broadcast %cst_7 : f32 to vector<8x256xf32>
    %16 = arith.addf %15, %14 : vector<8x256xf32>
    %cst_8 = arith.constant 5.000000e-01 : f32
    %17 = vector.broadcast %cst_8 : f32 to vector<8x256xf32>
    %18 = arith.mulf %17, %16 : vector<8x256xf32>
    %19 = arith.mulf %6, %18 : vector<8x256xf32>
    %20 = arith.truncf %19 : vector<8x256xf32> to vector<8x256xbf16>
    %c0_9 = arith.constant 0 : index
    %c0_10 = arith.constant 0 : index
    %21 = vector.load %arg4[%c0_9, %c0_10] : memref<256x128xbf16, #tpu.memory_space<vmem>>, vector<256x128xbf16>
    %cst_11 = arith.constant dense<0.000000e+00> : vector<8x128xf32>
    %22 = tpu.matmul %20, %21, %cst_11 {dimension_numbers = #tpu.dot_dimension_numbers<[1], [0], [0], [1], [0, 0, 1, 1], [], []>} : vector<8x256xbf16>, vector<256x128xbf16>, vector<8x128xf32> -> vector<8x128xf32>
    %c0_12 = arith.constant 0 : index
    %c0_13 = arith.constant 0 : index
    %23 = vector.load %arg5[%c0_12, %c0_13] : memref<1x128xf32, #tpu.memory_space<vmem>>, vector<1x128xf32>
    %24 = vector.broadcast %23 : vector<1x128xf32> to vector<8x128xf32>
    %25 = arith.addf %22, %24 : vector<8x128xf32>
    %c0_14 = arith.constant 0 : index
    %c0_15 = arith.constant 0 : index
    %26 = vector.load %arg1[%c0_14, %c0_15] : memref<8x128xf32, #tpu.memory_space<vmem>>, vector<8x128xf32>
    %27 = arith.addf %25, %26 : vector<8x128xf32>
    %c0_16 = arith.constant 0 : index
    %c0_17 = arith.constant 0 : index
    %28 = vector.load %arg6[%c0_16, %c0_17] : memref<8x128xf32, #tpu.memory_space<vmem>>, vector<8x128xf32>
    tpu.vector_store %arg6[%c0_16, %c0_17], %27 {strides = array<i32>} : memref<8x128xf32, #tpu.memory_space<vmem>>, vector<8x128xf32>,
    return
  }
  func.func @transform_0(%arg0: i32) -> (i32, i32) {
    %c0_i32 = arith.constant 0 : i32
    %c0_i32_0 = arith.constant 0 : i32
    return %arg0, %c0_i32 : i32, i32
  }
  func.func @transform_1(%arg0: i32) -> (i32, i32) {
    %c0_i32 = arith.constant 0 : i32
    %c0_i32_0 = arith.constant 0 : i32
    %c0_i32_1 = arith.constant 0 : i32
    return %c0_i32, %c0_i32_0 : i32, i32
  }
  func.func @transform_2(%arg0: i32) -> (i32, i32) {
    %c0_i32 = arith.constant 0 : i32
    %c0_i32_0 = arith.constant 0 : i32
    %c0_i32_1 = arith.constant 0 : i32
    return %c0_i32, %c0_i32_0 : i32, i32
  }
  func.func @transform_3(%arg0: i32) -> (i32, i32) {
    %c0_i32 = arith.constant 0 : i32
    %c0_i32_0 = arith.constant 0 : i32
    %c0_i32_1 = arith.constant 0 : i32
    return %c0_i32, %c0_i32_0 : i32, i32
  }
  func.func @transform_4(%arg0: i32) -> (i32, i32) {
    %c0_i32 = arith.constant 0 : i32
    %c0_i32_0 = arith.constant 0 : i32
    %c0_i32_1 = arith.constant 0 : i32
    return %c0_i32, %c0_i32_0 : i32, i32
  }
  func.func @transform_5(%arg0: i32) -> (i32, i32) {
    %c0_i32 = arith.constant 0 : i32
    %c0_i32_0 = arith.constant 0 : i32
    return %arg0, %c0_i32 : i32, i32
  }
}

</mosaic_0001>

<llo_original>
// kernel: apply.1
$region0: #{apply.1}
  #allocation0 [shape = 'u32[]', space=smem, size = 0x4, offset = 0x4, fixed_abs, tag = 'smem constant byte address 0x4 - core index']
  #allocation1 [shape = 'u32[144,128]{1,0:T(1,128)}', space=vmem, size = 0x12000, scoped, tag = 'internal scratch']
  %s0 = inlined_call_operand.vmem [shape: f32[16,128], index: 0, kind: input, shape index: {}]
  %s1 = inlined_call_operand.vmem [shape: bf16[128,256], index: 1, kind: input, shape index: {}]
  %s2 = inlined_call_operand.vmem [shape: f32[1,256], index: 2, kind: input, shape index: {}]
  %s3 = inlined_call_operand.vmem [shape: bf16[256,128], index: 3, kind: input, shape index: {}]
  %s4 = inlined_call_operand.vmem [shape: f32[1,128], index: 4, kind: input, shape index: {}]
  %s5 = inlined_call_operand.vmem [shape: f32[16,128], index: 5, kind: output, shape index: {}]
  %s6 = sld [smem:[#allocation0]]
  $region53: #{apply.1} parent=0
    _
  %s8 = ssub.s32 1, %s6
  %s9 = scalar_select 0, %s8, %s6
  loop: start=0, step=1, limit=4
  $region2: #{apply.1} parent=0 // loop_pre_header
    _
  $region3: #{apply.1} parent=0 // loop_header
    %s11 = sphi 0, %s15
    %p12 = scmp.ge.s32.totalorder %s11, 4
    %s21 = sphi 0, %s23
    %s24 = sphi 0, %s21
    %s25 = sphi 0, %s24
    %s41 = sphi 0, %s25
    %s45 = sphi 0, %s45
    %s47 = sphi 0, %s45
    %s48 = sphi 0, %s47
    %s62 = sphi 0, %s48
    %s66 = sphi 0, %s66
    %s68 = sphi 0, %s66
    %s69 = sphi 0, %s68
    %s83 = sphi 0, %s69
    %s87 = sphi 0, %s87
    %s89 = sphi 0, %s87
    %s90 = sphi 0, %s89
    %s104 = sphi 0, %s90
    %s108 = sphi 0, %s108
    %s110 = sphi 0, %s108
    %s111 = sphi 0, %s110
    %s125 = sphi 0, %s111
    %s131 = sphi 0, %s133
    %s134 = sphi 0, %s131
    %s135 = sphi 0, %s134
    %s151 = sphi 0, %s135
  $region4: #{apply.1} parent=0 // loop_header_branch
    %14 = sbr.rel (%p12) target = $region8
  $region5: #{apply.1} parent=0 // loop_body
    %s16 = ssub.s32 %s11, 1
    %s17 = ssub.s32 %s11, 2
    %s18 = sadd.s32 %s11, 1
    %s19 = ssub.s32 %s11, %s18
    %p20 = scmp.eq.s32.totalorder %s19, 0
    %s22 = sadd.s32 %s21, 1
    %s23 = scalar_select %p20, %s21, %s22
    %p26 = pneg %p20
    %p27 = scmp.eq.s32.totalorder %s11, 1
    %p28 = por %p26, %p27
    %p29 = scmp.ne.s32.totalorder %s21, %s24
    %p30 = scmp.eq.s32.totalorder %s11, 0
    %p31 = por %p29, %p30
    %p32 = scmp.ne.s32.totalorder %s21, %s24
    %p33 = scmp.eq.s32.totalorder %s16, 1
    %p34 = por %p32, %p33
    %p35 = scmp.ne.s32.totalorder %s24, %s25
    %p36 = scmp.eq.s32.totalorder %s16, 0
    %p37 = por %p35, %p36
    %p38 = scmp.ne.s32.totalorder %s24, %s25
    %p39 = scmp.eq.s32.totalorder %s17, 1
    %p40 = por %p38, %p39
    %p42 = scmp.ne.s32.totalorder %s25, %s41
    %p43 = scmp.eq.s32.totalorder %s17, 0
    %p44 = por %p42, %p43
    %s46 = sadd.s32 %s45, 1
    %p49 = scmp.eq.s32.totalorder %s11, 1
    %p50 = scmp.ne.s32.totalorder %s45, %s47
    %p51 = scmp.eq.s32.totalorder %s11, 0
    %p52 = por %p50, %p51
    %p53 = scmp.ne.s32.totalorder %s45, %s47
    %p54 = scmp.eq.s32.totalorder %s16, 1
    %p55 = por %p53, %p54
    %p56 = scmp.ne.s32.totalorder %s47, %s48
    %p57 = scmp.eq.s32.totalorder %s16, 0
    %p58 = por %p56, %p57
    %p59 = scmp.ne.s32.totalorder %s47, %s48
    %p60 = scmp.eq.s32.totalorder %s17, 1
    %p61 = por %p59, %p60
    %p63 = scmp.ne.s32.totalorder %s48, %s62
    %p64 = scmp.eq.s32.totalorder %s17, 0
    %p65 = por %p63, %p64
    %s67 = sadd.s32 %s66, 1
    %p70 = scmp.eq.s32.totalorder %s11, 1
    %p71 = scmp.ne.s32.totalorder %s66, %s68
    %p72 = scmp.eq.s32.totalorder %s11, 0
    %p73 = por %p71, %p72
    %p74 = scmp.ne.s32.totalorder %s66, %s68
    %p75 = scmp.eq.s32.totalorder %s16, 1
    %p76 = por %p74, %p75
    %p77 = scmp.ne.s32.totalorder %s68, %s69
    %p78 = scmp.eq.s32.totalorder %s16, 0
    %p79 = por %p77, %p78
    %p80 = scmp.ne.s32.totalorder %s68, %s69
    %p81 = scmp.eq.s32.totalorder %s17, 1
    %p82 = por %p80, %p81
    %p84 = scmp.ne.s32.totalorder %s69, %s83
    %p85 = scmp.eq.s32.totalorder %s17, 0
    %p86 = por %p84, %p85
    %s88 = sadd.s32 %s87, 1
    %p91 = scmp.eq.s32.totalorder %s11, 1
    %p92 = scmp.ne.s32.totalorder %s87, %s89
    %p93 = scmp.eq.s32.totalorder %s11, 0
    %p94 = por %p92, %p93
    %p95 = scmp.ne.s32.totalorder %s87, %s89
    %p96 = scmp.eq.s32.totalorder %s16, 1
    %p97 = por %p95, %p96
    %p98 = scmp.ne.s32.totalorder %s89, %s90
    %p99 = scmp.eq.s32.totalorder %s16, 0
    %p100 = por %p98, %p99
    %p101 = scmp.ne.s32.totalorder %s89, %s90
    %p102 = scmp.eq.s32.totalorder %s17, 1
    %p103 = por %p101, %p102
    %p105 = scmp.ne.s32.totalorder %s90, %s104
    %p106 = scmp.eq.s32.totalorder %s17, 0
    %p107 = por %p105, %p106
    %s109 = sadd.s32 %s108, 1
    %p112 = scmp.eq.s32.totalorder %s11, 1
    %p113 = scmp.ne.s32.totalorder %s108, %s110
    %p114 = scmp.eq.s32.totalorder %s11, 0
    %p115 = por %p113, %p114
    %p116 = scmp.ne.s32.totalorder %s108, %s110
    %p117 = scmp.eq.s32.totalorder %s16, 1
    %p118 = por %p116, %p117
    %p119 = scmp.ne.s32.totalorder %s110, %s111
    %p120 = scmp.eq.s32.totalorder %s16, 0
    %p121 = por %p119, %p120
    %p122 = scmp.ne.s32.totalorder %s110, %s111
    %p123 = scmp.eq.s32.totalorder %s17, 1
    %p124 = por %p122, %p123
    %p126 = scmp.ne.s32.totalorder %s111, %s125
    %p127 = scmp.eq.s32.totalorder %s17, 0
    %p128 = por %p126, %p127
    %s129 = ssub.s32 %s11, %s18
    %p130 = scmp.eq.s32.totalorder %s129, 0
    %s132 = sadd.s32 %s131, 1
    %s133 = scalar_select %p130, %s131, %s132
    %p136 = pneg %p130
    %p137 = scmp.eq.s32.totalorder %s11, 1
    %p138 = por %p136, %p137
    %p139 = scmp.ne.s32.totalorder %s131, %s134
    %p140 = scmp.eq.s32.totalorder %s11, 0
    %p141 = por %p139, %p140
    %p142 = scmp.ne.s32.totalorder %s131, %s134
    %p143 = scmp.eq.s32.totalorder %s16, 1
    %p144 = por %p142, %p143
    %p145 = scmp.ne.s32.totalorder %s134, %s135
    %p146 = scmp.eq.s32.totalorder %s16, 0
    %p147 = por %p145, %p146
    %p148 = scmp.ne.s32.totalorder %s134, %s135
    %p149 = scmp.eq.s32.totalorder %s17, 1
    %p150 = por %p148, %p149
    %p152 = scmp.ne.s32.totalorder %s135, %s151
    %p153 = scmp.eq.s32.totalorder %s17, 0
    %p154 = por %p152, %p153
    %p155 = scmp.le.s32.totalorder 1, %s11
    %p156 = scmp.lt.s32.totalorder %s11, 3
    %p157 = pnand %p155, %p156
    %p158 = pneg %p157
    // Predicated region
    $region9: #{apply.1} parent=5 // pred_check
      _
    $region10: #{apply.1} parent=5 // pred_check_branch
      %160 = sbr.rel (%p157) target = $region12
    $region11: #{apply.1} parent=5 // pred_region
      %s161 = ssub.s32 %s11, 1
      // Predicated region
      $region13: #{apply.1} parent=11 // pred_check
        %p162 = pneg %p58
      $region14: #{apply.1} parent=11 // pred_check_branch
        %164 = sbr.rel (%p162) target = $region16
      $region15: #{apply.1} parent=11 // pred_region
        _
      $region16: #{apply.1} parent=11 // pred_fallthru
        _
      // Predicated region
      $region17: #{apply.1} parent=11 // pred_check
        %p165 = pneg %p79
      $region18: #{apply.1} parent=11 // pred_check_branch
        %167 = sbr.rel (%p165) target = $region20
      $region19: #{apply.1} parent=11 // pred_region
        _
      $region20: #{apply.1} parent=11 // pred_fallthru
        _
      // Predicated region
      $region21: #{apply.1} parent=11 // pred_check
        %p168 = pneg %p100
      $region22: #{apply.1} parent=11 // pred_check_branch
        %170 = sbr.rel (%p168) target = $region24
      $region23: #{apply.1} parent=11 // pred_region
        _
      $region24: #{apply.1} parent=11 // pred_fallthru
        _
      // Predicated region
      $region25: #{apply.1} parent=11 // pred_check
        %p171 = pneg %p121
      $region26: #{apply.1} parent=11 // pred_check_branch
        %173 = sbr.rel (%p171) target = $region28
      $region27: #{apply.1} parent=11 // pred_region
        _
      $region28: #{apply.1} parent=11 // pred_fallthru
        _
    $region12: #{apply.1} parent=5 // pred_fallthru
      _
    %p174 = scmp.lt.s32.totalorder %s11, 2
    // Predicated region
    $region29: #{apply.1} parent=5 // pred_check
      %p175 = pneg %p174
    $region30: #{apply.1} parent=5 // pred_check_branch
      %177 = sbr.rel (%p175) target = $region32
    $region31: #{apply.1} parent=5 // pred_region
      // Predicated region
      $region33: #{apply.1} parent=31 // pred_check
        %p178 = pneg %p31
      $region34: #{apply.1} parent=31 // pred_check_branch
        %180 = sbr.rel (%p178) target = $region36
      $region35: #{apply.1} parent=31 // pred_region
        %p181 = scmp.lt.s32.totalorder %s11, 1
        %s182 = scalar_select %p181, %s11, 1
        %s183 = smul.addr %s182, 8
        %s184 = scalar_lea.vmem %s0, %s183
      $region36: #{apply.1} parent=31 // pred_fallthru
        _
    $region32: #{apply.1} parent=5 // pred_fallthru
      _
    %p185 = scmp.le.s32.totalorder 1, %s11
    %p186 = scmp.lt.s32.totalorder %s11, 3
    %p187 = pnand %p185, %p186
    %p188 = pneg %p187
    // Predicated region
    $region37: #{apply.1} parent=5 // pred_check
      _
    $region38: #{apply.1} parent=5 // pred_check_branch
      %190 = sbr.rel (%p187) target = $region40
    $region39: #{apply.1} parent=5 // pred_region
      %s191 = ssub.s32 %s11, 1
      %p192 = scmp.lt.s32.totalorder %s16, 1
      %s193 = scalar_select %p192, %s16, 1
      %s194 = smul.addr %s193, 8
      %s195 = scalar_lea.vmem %s0, %s194
      %p196 = pneg %p37
      %p197 = pneg %p34
      %p198 = pneg %p58
      %p199 = pneg %p55
      %p200 = pneg %p79
      %p201 = pneg %p76
      %p202 = pneg %p100
      %p203 = pneg %p97
      %p204 = pneg %p121
      %p205 = pneg %p118
      %p206 = pneg %p147
      %p207 = pneg %p144
      %p208 = scmp.lt.s32.totalorder %s16, 1
      %s209 = scalar_select %p208, %s16, 1
      %s210 = smul.addr %s209, 8
      %s211 = scalar_lea.vmem %s5, %s210
      %p212 = scmp.lt.s32.totalorder %s16, 1
      %s213 = scalar_select %p212, %s16, 1
      %s214 = smul.addr %s213, 8
      %s215 = scalar_lea.vmem %s0, %s214
      %p216 = scmp.lt.s32.totalorder %s16, 1
      %s217 = scalar_select %p216, %s16, 1
      %s218 = smul.addr %s217, 8
      %s219 = scalar_lea.vmem %s5, %s218
      %v221 = vld [vmem:[%s215] sm:$0xff]
      %v222 = vpack.c.bf16 %v221, %v221
      %v223 = vld [vmem:[%s1] sm:$0xff]
      %v224 = vld [vmem:[%s1 + $0x8] sm:$0xff]
      %v225 = vld [vmem:[%s1 + $0x10] sm:$0xff]
      %v226 = vld [vmem:[%s1 + $0x18] sm:$0xff]
      %v227 = vld [vmem:[%s1 + $0x20] sm:$0xff]
      %v228 = vld [vmem:[%s1 + $0x28] sm:$0xff]
      %v229 = vld [vmem:[%s1 + $0x30] sm:$0xff]
      %v230 = vld [vmem:[%s1 + $0x38] sm:$0xff]
      %v231 = vld [vmem:[%s1 + $0x40] sm:$0xff]
      %v232 = vld [vmem:[%s1 + $0x48] sm:$0xff]
      %v233 = vld [vmem:[%s1 + $0x50] sm:$0xff]
      %v234 = vld [vmem:[%s1 + $0x58] sm:$0xff]
      %v235 = vld [vmem:[%s1 + $0x60] sm:$0xff]
      %v236 = vld [vmem:[%s1 + $0x68] sm:$0xff]
      %v237 = vld [vmem:[%s1 + $0x70] sm:$0xff]
      %v238 = vld [vmem:[%s1 + $0x78] sm:$0xff]
      %v239 = vld [vmem:[%s2] sm:$0x3]
      %v241 = vlaneseq
      %v242 = vshrl.u32 %v241, 7
      %v243 = vsub.s32 0, %v242
      %v244 = vrot.slane %v239, %v243
      %v245 = vlaneseq
      %v246 = vshrl.u32 %v245, 7
      %v247 = vsub.s32 1, %v246
      %v248 = vrot.slane %v239, %v247
      %v267 = vunpack.c.l.b16 %v223
      %v268 = vunpack.c.h.b16 %v223
      %v269 = vunpack.c.l.b16 %v224
      %v270 = vunpack.c.h.b16 %v224
      %v271 = vunpack.c.l.b16 %v225
      %v272 = vunpack.c.h.b16 %v225
      %v273 = vunpack.c.l.b16 %v226
      %v274 = vunpack.c.h.b16 %v226
      %v275 = vunpack.c.l.b16 %v227
      %v276 = vunpack.c.h.b16 %v227
      %v277 = vunpack.c.l.b16 %v228
      %v278 = vunpack.c.h.b16 %v228
      %v279 = vunpack.c.l.b16 %v229
      %v280 = vunpack.c.h.b16 %v229
      %v281 = vunpack.c.l.b16 %v230
      %v282 = vunpack.c.h.b16 %v230
      %v283 = vunpack.c.l.b16 %v231
      %v284 = vunpack.c.h.b16 %v231
      %v285 = vunpack.c.l.b16 %v232
      %v286 = vunpack.c.h.b16 %v232
      %v287 = vunpack.c.l.b16 %v233
      %v288 = vunpack.c.h.b16 %v233
      %v289 = vunpack.c.l.b16 %v234
      %v290 = vunpack.c.h.b16 %v234
      %v291 = vunpack.c.l.b16 %v235
      %v292 = vunpack.c.h.b16 %v235
      %v293 = vunpack.c.l.b16 %v236
      %v294 = vunpack.c.h.b16 %v236
      %v295 = vunpack.c.l.b16 %v237
      %v296 = vunpack.c.h.b16 %v237
      %v297 = vunpack.c.l.b16 %v238
      %v298 = vunpack.c.h.b16 %v238
      %v299 = vpack.c.b16 %v269, %v267
      %v300 = vpack.c.b16 %v270, %v268
      %v301 = vpack.c.b16 %v273, %v271
      %v302 = vpack.c.b16 %v274, %v272
      %v303 = vpack.c.b16 %v277, %v275
      %v304 = vpack.c.b16 %v278, %v276
      %v305 = vpack.c.b16 %v281, %v279
      %v306 = vpack.c.b16 %v282, %v280
      %v307 = vpack.c.b16 %v285, %v283
      %v308 = vpack.c.b16 %v286, %v284
      %v309 = vpack.c.b16 %v289, %v287
      %v310 = vpack.c.b16 %v290, %v288
      %v311 = vpack.c.b16 %v293, %v291
      %v312 = vpack.c.b16 %v294, %v292
      %v313 = vpack.c.b16 %v297, %v295
      %v314 = vpack.c.b16 %v298, %v296
      %331 = vmatprep.subr.bf16.mxu0 %v300
      %332 = vmatpush1.bf16.msra.mxu0 %v299
      %333 = vmatprep.subr.bf16.mxu0 %v302
      %334 = vmatpush1.bf16.msra.mxu0 %v301
      %335 = vmatprep.subr.bf16.mxu0 %v304
      %336 = vmatpush1.bf16.msra.mxu0 %v303
      %337 = vmatprep.subr.bf16.mxu0 %v306
      %338 = vmatpush1.bf16.msra.mxu0 %v305
      %339 = vmatprep.subr.bf16.mxu0 %v308
      %340 = vmatpush1.bf16.msra.mxu0 %v307
      %341 = vmatprep.subr.bf16.mxu0 %v310
      %342 = vmatpush1.bf16.msra.mxu0 %v309
      %343 = vmatprep.subr.bf16.mxu0 %v312
      %344 = vmatpush1.bf16.msra.mxu0 %v311
      %345 = vmatprep.subr.bf16.mxu0 %v314
      %346 = vmatpush1.bf16.msra.mxu0 %v313
      %347 = vmatprep.subr.bf16.mxu0 0
      %348 = vmatpush1.bf16.msra.mxu0 0
      %349 = vmatprep.subr.bf16.mxu0 0
      %350 = vmatpush1.bf16.msra.mxu0 0
      %351 = vmatprep.subr.bf16.mxu0 0
      %352 = vmatpush1.bf16.msra.mxu0 0
      %353 = vmatprep.subr.bf16.mxu0 0
      %354 = vmatpush1.bf16.msra.mxu0 0
      %355 = vmatprep.subr.bf16.mxu0 0
      %356 = vmatpush1.bf16.msra.mxu0 0
      %357 = vmatprep.subr.bf16.mxu0 0
      %358 = vmatpush1.bf16.msra.mxu0 0
      %359 = vmatprep.subr.bf16.mxu0 0
      %360 = vmatpush1.bf16.msra.mxu0 0
      %361 = vmatprep.subr.bf16.mxu0 0
      %362 = vmatpush1.bf16.msra.mxu0 0
      %363 = vmatprep.mubr.bf16.mxu0 0
      %364 = vmatmul.mubr.bf16.gmra.mrb[0].mxu0 %v222
      %v365 = vpop.f32.mrb[0].mxu0
      %v366 = vadd.f32 %v244, %v365
      %v367 = vpop.f32.mrb[0].mxu0
      %v368 = vadd.f32 %v248, %v367
      %v369 = vpop.f32.mrb[0].mxu0
      %v370 = vpop.f32.mrb[0].mxu0
      %371 = vdwg.mxu0
      %v372 = vmul.f32 %v366, %v366
      %v373 = vmul.f32 %v368, %v368
      %v374 = vmul.f32 %v366, %v372
      %v375 = vmul.f32 %v368, %v373
      %v376 = vmul.f32 %v374, 0.044715
      %v377 = vmul.f32 %v375, 0.044715
      %v378 = vadd.f32 %v366, %v376
      %v379 = vadd.f32 %v368, %v377
      %v380 = vmul.f32 %v378, 0.7978846
      %v381 = vmul.f32 %v379, 0.7978846
      %v382 = vtanh.pop %v380
      %v383 = vtanh.pop %v381
      %v384 = vadd.f32 %v382, 1.0
      %v385 = vadd.f32 %v383, 1.0
      %v386 = vmul.f32 %v384, 0.5
      %v387 = vmul.f32 %v385, 0.5
      %v388 = vmul.f32 %v366, %v386
      %v389 = vmul.f32 %v368, %v387
      %v390 = vpack.c.bf16 %v388, %v388
      %v391 = vpack.c.bf16 %v389, %v389
      %v392 = vld [vmem:[%s3] sm:$0xf]
      %v393 = vld [vmem:[%s3 + $0x4] sm:$0xf]
      %v394 = vld [vmem:[%s3 + $0x8] sm:$0xf]
      %v395 = vld [vmem:[%s3 + $0xc] sm:$0xf]
      %v396 = vld [vmem:[%s3 + $0x10] sm:$0xf]
      %v397 = vld [vmem:[%s3 + $0x14] sm:$0xf]
      %v398 = vld [vmem:[%s3 + $0x18] sm:$0xf]
      %v399 = vld [vmem:[%s3 + $0x1c] sm:$0xf]
      %v400 = vld [vmem:[%s3 + $0x20] sm:$0xf]
      %v401 = vld [vmem:[%s3 + $0x24] sm:$0xf]
      %v402 = vld [vmem:[%s3 + $0x28] sm:$0xf]
      %v403 = vld [vmem:[%s3 + $0x2c] sm:$0xf]
      %v404 = vld [vmem:[%s3 + $0x30] sm:$0xf]
      %v405 = vld [vmem:[%s3 + $0x34] sm:$0xf]
      %v406 = vld [vmem:[%s3 + $0x38] sm:$0xf]
      %v407 = vld [vmem:[%s3 + $0x3c] sm:$0xf]
      %v408 = vld [vmem:[%s3 + $0x40] sm:$0xf]
      %v409 = vld [vmem:[%s3 + $0x44] sm:$0xf]
      %v410 = vld [vmem:[%s3 + $0x48] sm:$0xf]
      %v411 = vld [vmem:[%s3 + $0x4c] sm:$0xf]
      %v412 = vld [vmem:[%s3 + $0x50] sm:$0xf]
      %v413 = vld [vmem:[%s3 + $0x54] sm:$0xf]
      %v414 = vld [vmem:[%s3 + $0x58] sm:$0xf]
      %v415 = vld [vmem:[%s3 + $0x5c] sm:$0xf]
      %v416 = vld [vmem:[%s3 + $0x60] sm:$0xf]
      %v417 = vld [vmem:[%s3 + $0x64] sm:$0xf]
      %v418 = vld [vmem:[%s3 + $0x68] sm:$0xf]
      %v419 = vld [vmem:[%s3 + $0x6c] sm:$0xf]
      %v420 = vld [vmem:[%s3 + $0x70] sm:$0xf]
      %v421 = vld [vmem:[%s3 + $0x74] sm:$0xf]
      %v422 = vld [vmem:[%s3 + $0x78] sm:$0xf]
      %v423 = vld [vmem:[%s3 + $0x7c] sm:$0xf]
      %v424 = vld [vmem:[%s4] sm:$0x1]
      %v426 = vlaneseq
      %v427 = vshrl.u32 %v426, 7
      %v428 = vsub.s32 0, %v427
      %v429 = vrot.slane %v424, %v428
      %v463 = vunpack.c.l.b16 %v392
      %v464 = vunpack.c.l.b16 %v393
      %v465 = vunpack.c.l.b16 %v394
      %v466 = vunpack.c.l.b16 %v395
      %v467 = vunpack.c.l.b16 %v396
      %v468 = vunpack.c.l.b16 %v397
      %v469 = vunpack.c.l.b16 %v398
      %v470 = vunpack.c.l.b16 %v399
      %v471 = vunpack.c.l.b16 %v400
      %v472 = vunpack.c.l.b16 %v401
      %v473 = vunpack.c.l.b16 %v402
      %v474 = vunpack.c.l.b16 %v403
      %v475 = vunpack.c.l.b16 %v404
      %v476 = vunpack.c.l.b16 %v405
      %v477 = vunpack.c.l.b16 %v406
      %v478 = vunpack.c.l.b16 %v407
      %v479 = vunpack.c.l.b16 %v408
      %v480 = vunpack.c.l.b16 %v409
      %v481 = vunpack.c.l.b16 %v410
      %v482 = vunpack.c.l.b16 %v411
      %v483 = vunpack.c.l.b16 %v412
      %v484 = vunpack.c.l.b16 %v413
      %v485 = vunpack.c.l.b16 %v414
      %v486 = vunpack.c.l.b16 %v415
      %v487 = vunpack.c.l.b16 %v416
      %v488 = vunpack.c.l.b16 %v417
      %v489 = vunpack.c.l.b16 %v418
      %v490 = vunpack.c.l.b16 %v419
      %v491 = vunpack.c.l.b16 %v420
      %v492 = vunpack.c.l.b16 %v421
      %v493 = vunpack.c.l.b16 %v422
      %v494 = vunpack.c.l.b16 %v423
      %v495 = vpack.c.b16 %v464, %v463
      %v496 = vpack.c.b16 %v466, %v465
      %v497 = vpack.c.b16 %v468, %v467
      %v498 = vpack.c.b16 %v470, %v469
      %v499 = vpack.c.b16 %v472, %v471
      %v500 = vpack.c.b16 %v474, %v473
      %v501 = vpack.c.b16 %v476, %v475
      %v502 = vpack.c.b16 %v478, %v477
      %v503 = vpack.c.b16 %v480, %v479
      %v504 = vpack.c.b16 %v482, %v481
      %v505 = vpack.c.b16 %v484, %v483
      %v506 = vpack.c.b16 %v486, %v485
      %v507 = vpack.c.b16 %v488, %v487
      %v508 = vpack.c.b16 %v490, %v489
      %v509 = vpack.c.b16 %v492, %v491
      %v510 = vpack.c.b16 %v494, %v493
      %527 = vmatprep.subr.bf16.mxu0 0
      %528 = vmatpush1.bf16.msra.mxu0 %v495
      %529 = vmatprep.subr.bf16.mxu0 0
      %530 = vmatpush1.bf16.msra.mxu0 %v496
      %531 = vmatprep.subr.bf16.mxu0 0
      %532 = vmatpush1.bf16.msra.mxu0 %v497
      %533 = vmatprep.subr.bf16.mxu0 0
      %534 = vmatpush1.bf16.msra.mxu0 %v498
      %535 = vmatprep.subr.bf16.mxu0 0
      %536 = vmatpush1.bf16.msra.mxu0 %v499
      %537 = vmatprep.subr.bf16.mxu0 0
      %538 = vmatpush1.bf16.msra.mxu0 %v500
      %539 = vmatprep.subr.bf16.mxu0 0
      %540 = vmatpush1.bf16.msra.mxu0 %v501
      %541 = vmatprep.subr.bf16.mxu0 0
      %542 = vmatpush1.bf16.msra.mxu0 %v502
      %543 = vmatprep.subr.bf16.mxu0 0
      %544 = vmatpush1.bf16.msra.mxu0 %v503
      %545 = vmatprep.subr.bf16.mxu0 0
      %546 = vmatpush1.bf16.msra.mxu0 %v504
      %547 = vmatprep.subr.bf16.mxu0 0
      %548 = vmatpush1.bf16.msra.mxu0 %v505
      %549 = vmatprep.subr.bf16.mxu0 0
      %550 = vmatpush1.bf16.msra.mxu0 %v506
      %551 = vmatprep.subr.bf16.mxu0 0
      %552 = vmatpush1.bf16.msra.mxu0 %v507
      %553 = vmatprep.subr.bf16.mxu0 0
      %554 = vmatpush1.bf16.msra.mxu0 %v508
      %555 = vmatprep.subr.bf16.mxu0 0
      %556 = vmatpush1.bf16.msra.mxu0 %v509
      %557 = vmatprep.subr.bf16.mxu0 0
      %558 = vmatpush1.bf16.msra.mxu0 %v510
      %559 = vmatprep.mubr.bf16.mxu0 %v391
      %560 = vmatmul.mubr.bf16.gmra.mrb[0].mxu0 %v390
      %v561 = vpop.f32.mrb[0].mxu0
      %v562 = vadd.f32 %v429, %v561
      %v563 = vpop.f32.mrb[0].mxu0
      %v564 = vpop.f32.mrb[0].mxu0
      %v565 = vpop.f32.mrb[0].mxu0
      %566 = vdwg.mxu0
      %v567 = vadd.f32 %v562, %v221
      %568 = vst [vmem:[%s219] sm:$0xff] %v567
      %p569 = scmp.lt.s32.totalorder %s16, 1
      %s570 = scalar_select %p569, %s16, 1
      %s571 = smul.addr %s570, 8
      %s572 = scalar_lea.vmem %s5, %s571
      // Predicated region
      $region41: #{apply.1} parent=39 // pred_check
        %p573 = pneg %p144
      $region42: #{apply.1} parent=39 // pred_check_branch
        %575 = sbr.rel (%p573) target = $region44
      $region43: #{apply.1} parent=39 // pred_region
        _
      $region44: #{apply.1} parent=39 // pred_fallthru
        _
    $region40: #{apply.1} parent=5 // pred_fallthru
      _
    %p576 = scmp.le.s32.totalorder 2, %s11
    // Predicated region
    $region45: #{apply.1} parent=5 // pred_check
      %p577 = pneg %p576
    $region46: #{apply.1} parent=5 // pred_check_branch
      %579 = sbr.rel (%p577) target = $region48
    $region47: #{apply.1} parent=5 // pred_region
      %s580 = ssub.s32 %s11, 2
      // Predicated region
      $region49: #{apply.1} parent=47 // pred_check
        %p581 = pneg %p150
      $region50: #{apply.1} parent=47 // pred_check_branch
        %583 = sbr.rel (%p581) target = $region52
      $region51: #{apply.1} parent=47 // pred_region
        %p584 = scmp.lt.s32.totalorder %s17, 1
        %s585 = scalar_select %p584, %s17, 1
        %s586 = smul.addr %s585, 8
        %s587 = scalar_lea.vmem %s5, %s586
      $region52: #{apply.1} parent=47 // pred_fallthru
        _
    $region48: #{apply.1} parent=5 // pred_fallthru
      _
  $region6: #{apply.1} parent=0 // loop_footer
    %s15 = sadd.s32 1, %s11
  $region7: #{apply.1} parent=0 // loop_footer_branch
    %10 = sbr.rel target = $region3
  $region8: #{apply.1} parent=0 // loop_exit
    _

</llo_original>
